<compile_context>
chip_gen: v6e
topology: v6e:2x2x1
jax: 0.10.0
libtpu: 0.0.40
codegen_flags: <defaults>
</compile_context>

<pallas_src>
import math

import jax
import jax.numpy as jnp
import numpy as np
from jax.experimental import pallas as pl
from jax.experimental.pallas import tpu as pltpu


# ----------------------------- kernels --------------------------------------
def _fold_phase_kernel(x_ref, gf_ref, phase_ref, o_ref):
    """dim < 256 path.  x:(TB,k) gf:(k,W) phase:(1,W) o:(TB,W).

    o = sin( sum_i x[:, i] * gf[i, :]  +  phase )
    gf is block-diagonal (group i carries the dim frequencies, zeros elsewhere),
    so the sum is an exact f32 expansion of each scalar across its lane group;
    phase = [0 .. 0 | pi/2 .. pi/2] per group turns the cos half into sin.
    """
    k = gf_ref.shape[0]
    emb = x_ref[:, 0:1] * gf_ref[0:1, :]
    for i in range(1, k):                       # static; k in {1, 2, 4, ...}
        emb = emb + x_ref[:, i:i + 1] * gf_ref[i:i + 1, :]
    o_ref[...] = jnp.sin(emb + phase_ref[...]).astype(o_ref.dtype)


def _split_kernel(x_ref, freq_ref, o_ref):
    """dim >= 256 path.  x:(TB,1) freq:(1,half) o:(TB,2*half).  Exact sin|cos."""
    half = freq_ref.shape[1]
    emb = x_ref[...] * freq_ref[...]            # (TB, half), half >= 128
    o_ref[:, :half] = jnp.sin(emb).astype(o_ref.dtype)
    o_ref[:, half:] = jnp.cos(emb).astype(o_ref.dtype)


# ----------------------------- helpers ---------------------------------------
def _cdiv(a: int, b: int) -> int:
    return -(-a // b)


def _round_up(n: int, m: int) -> int:
    return ((n + m - 1) // m) * m


def _choose_block_rows(rows: int, width: int, out_es: int) -> int:
    """Row-tile size: aligned, >=4 grid steps when possible, ~24 MiB VMEM cap."""
    row_align = 8 if out_es >= 4 else (16 if out_es == 2 else 32)
    if rows <= row_align:
        return rows                              # single block == full height
    # Double-buffered out tile + double-buffered x tile.  The (block, k) f32
    # x block is lane-padded to 128 lanes in VMEM -> 512 B per row.
    budget = 24 << 20
    per_row = 2 * (width * out_es + 128 * 4)
    cap = max(row_align, budget // per_row)
    # Aim for >= 4 grid steps (v7x megacore sharding + writeback overlap).
    target = _round_up(_cdiv(rows, 4), row_align)
    blk = min(cap, target)
    blk = max(row_align, (blk // row_align) * row_align)
    return min(blk, _round_up(rows, row_align))


def _jnp_forward(x: jax.Array, dim: int) -> jax.Array:
    """Plain-XLA reference / small-problem fallback (matches the torch module)."""
    half = dim // 2
    scale = math.log(10000.0) / (half - 1)
    f = jnp.exp(jnp.arange(half, dtype=jnp.float32) * -scale)
    emb = x.astype(jnp.float32)[:, None] * f[None, :]
    return jnp.concatenate([jnp.sin(emb), jnp.cos(emb)], axis=-1)


# ----------------------------- public entry ----------------------------------
def sinusoidal_pos_emb(x: jax.Array, dim: int, *, out_dtype=jnp.float32,
                       block_rows: int | None = None,
                       force_pallas: bool = False) -> jax.Array:
    """Pallas equivalent of SinusoidalPosEmb(dim)(x).  x: (B,) -> (B, dim)."""
    assert x.ndim == 1, "x must be 1-D (batch of scalar positions)"
    assert dim % 2 == 0 and dim >= 4, "dim must be even and >= 4"
    b = int(x.shape[0])
    half = dim // 2
    out_es = jnp.dtype(out_dtype).itemsize

    # Host-side constants in f32 (matches the reference's f32 exp).
    scale = math.log(10000.0) / (half - 1)
    freqs_half = (np.arange(half, dtype=np.float32) * np.float32(-scale))
    freqs_half = np.exp(freqs_half).astype(np.float32)

    # Lane-fold factor for narrow dims.
    k = 1
    if dim < 128 and 128 % dim == 0 and b % (128 // dim) == 0:
        k = 128 // dim

    if not force_pallas:
        too_small = b * dim * out_es < (2 << 20)        # launch/DMA dominated
        lane_sparse = dim < 128 and k == 1              # can't restore density
        if too_small or lane_sparse:
            return _jnp_forward(x, dim).astype(out_dtype)

    compiler_params = pltpu.CompilerParams(
        dimension_semantics=("parallel",),              # independent row tiles
        vmem_limit_bytes=32 * 1024 * 1024,
    )

    if dim >= 256:
        # Exact sin/cos halves, two static >=128-lane stores.
        rows, width = b, dim
        blk = block_rows if block_rows is not None else _choose_block_rows(rows, width, out_es)
        x2d = x.astype(jnp.float32).reshape(rows, 1)
        freqs_row = jnp.asarray(freqs_half[None, :])                    # (1, half)
        return pl.pallas_call(
            _split_kernel,
            out_shape=jax.ShapeDtypeStruct((rows, width), out_dtype),
            grid=(pl.cdiv(rows, blk),),
            in_specs=[
                pl.BlockSpec((blk, 1), lambda i: (i, 0)),               # x rows
                pl.BlockSpec((1, half), lambda i: (0, 0)),              # resident freqs
            ],
            out_specs=pl.BlockSpec((blk, width), lambda i: (i, 0)),
            compiler_params=compiler_params,
        )(x2d, freqs_row)

    # dim < 256: single full-width store, cos via sin(z + pi/2); for dim < 128
    # additionally fold k batch rows into the lane axis (width = k*dim = 128).
    rows, width = b // k, k * dim
    blk = block_rows if block_rows is not None else _choose_block_rows(rows, width, out_es)
    x2d = x.astype(jnp.float32).reshape(rows, k)

    freqs_full = np.concatenate([freqs_half, freqs_half])               # (dim,)
    phase_full = np.concatenate([np.zeros(half, np.float32),
                                 np.full(half, np.pi / 2.0, np.float32)])
    gf = np.zeros((k, width), np.float32)                               # block-diagonal freqs
    for i in range(k):
        gf[i, i * dim:(i + 1) * dim] = freqs_full
    gf = jnp.asarray(gf)
    phase = jnp.asarray(np.tile(phase_full, k)[None, :])                # (1, width)

    out = pl.pallas_call(
        _fold_phase_kernel,
        out_shape=jax.ShapeDtypeStruct((rows, width), out_dtype),
        grid=(pl.cdiv(rows, blk),),
        in_specs=[
            pl.BlockSpec((blk, k), lambda i: (i, 0)),                   # x rows (folded)
            pl.BlockSpec((k, width), lambda i: (0, 0)),                 # resident masked freqs
            pl.BlockSpec((1, width), lambda i: (0, 0)),                 # resident phase row
        ],
        out_specs=pl.BlockSpec((blk, width), lambda i: (i, 0)),
        compiler_params=compiler_params,
    )(x2d, gf, phase)
    # Row-major collapse (rows, k*dim) -> (b, dim): pure metadata, no copy.
    return out.reshape(b, dim)


# ----------------------------- demo / self-test -------------------------------
if __name__ == "__main__":
    key = jax.random.PRNGKey(0)
    k1, k2, k3 = jax.random.split(key, 3)

    # 1) Lane-folded path (dim < 128): B=64 timesteps, dim=32 -> k=4 fold.
    x1 = jax.random.uniform(k1, (64,), dtype=jnp.float32) * 1000.0
    y1 = jax.block_until_ready(sinusoidal_pos_emb(x1, 32, force_pallas=True))
    r1 = _jnp_forward(x1, 32)
    assert y1.shape == (64, 32)
    # cos(z) = sin(z + pi/2) rounding of (z + pi/2) in f32 for |z| up to ~1e3
    # introduces O(1e-4) absolute deviation -> atol 1e-3.
    assert jnp.allclose(y1, r1, atol=1e-3, rtol=1e-3), "mismatch (fold path)"

    # 2) Full-width phase path (128 <= dim < 256), ragged batch: exercises the
    #    no-pad / boundary-masked last grid step.
    x2 = jax.random.uniform(k2, (50,), dtype=jnp.float32) * 1000.0
    y2 = jax.block_until_ready(sinusoidal_pos_emb(x2, 128, force_pallas=True))
    r2 = _jnp_forward(x2, 128)
    assert y2.shape == (50, 128)
    assert jnp.allclose(y2, r2, atol=1e-3, rtol=1e-3), "mismatch (phase path)"

    # 3) Half-width exact sin/cos path (dim >= 256), ragged batch.
    x3 = jax.random.uniform(k3, (40,), dtype=jnp.float32) * 1000.0
    y3 = jax.block_until_ready(sinusoidal_pos_emb(x3, 256, force_pallas=True))
    r3 = _jnp_forward(x3, 256)
    assert y3.shape == (40, 256)
    assert jnp.allclose(y3, r3, atol=1e-3, rtol=1e-3), "mismatch (split path)"

    print("KERNEL_OK")
</pallas_src>

<mosaic_0001>
module attributes {stable_mosaic.version = 11 : i64} {
  func.func @_fold_phase_kernel(%arg0: i32, %arg1: memref<8x4xf32, #tpu.memory_space<vmem>>, %arg2: memref<4x128xf32, #tpu.memory_space<vmem>>, %arg3: memref<1x128xf32, #tpu.memory_space<vmem>>, %arg4: memref<8x128xf32, #tpu.memory_space<vmem>>) attributes {dimension_semantics = [#tpu.dimension_semantics<parallel>], iteration_bounds = array<i64: 2>, scalar_prefetch = 0 : i64, scratch_operands = 0 : i64, tpu.core_type = #tpu.core_type<tc>, window_params = [{transform_indices = @transform_0, window_bounds = array<i64: 8, 4>}, {pipeline_mode = #tpu.pipeline_mode<synchronous>, transform_indices = @transform_1, window_bounds = array<i64: 4, 128>}, {pipeline_mode = #tpu.pipeline_mode<synchronous>, transform_indices = @transform_2, window_bounds = array<i64: 1, 128>}, {transform_indices = @transform_3, window_bounds = array<i64: 8, 128>}]} {
    %c0 = arith.constant 0 : index
    %c0_0 = arith.constant 0 : index
    %0 = vector.load %arg1[%c0, %c0_0] : memref<8x4xf32, #tpu.memory_space<vmem>>, vector<8x1xf32>
    %c0_1 = arith.constant 0 : index
    %c0_2 = arith.constant 0 : index
    %1 = vector.load %arg2[%c0_1, %c0_2] : memref<4x128xf32, #tpu.memory_space<vmem>>, vector<1x128xf32>
    %2 = vector.broadcast %0 : vector<8x1xf32> to vector<8x128xf32>
    %3 = vector.broadcast %1 : vector<1x128xf32> to vector<8x128xf32>
    %4 = arith.mulf %2, %3 : vector<8x128xf32>
    %c0_3 = arith.constant 0 : index
    %c1 = arith.constant 1 : index
    %5 = vector.load %arg1[%c0_3, %c1] : memref<8x4xf32, #tpu.memory_space<vmem>>, vector<8x1xf32>
    %c1_4 = arith.constant 1 : index
    %c0_5 = arith.constant 0 : index
    %6 = vector.load %arg2[%c1_4, %c0_5] : memref<4x128xf32, #tpu.memory_space<vmem>>, vector<1x128xf32>
    %7 = vector.broadcast %5 : vector<8x1xf32> to vector<8x128xf32>
    %8 = vector.broadcast %6 : vector<1x128xf32> to vector<8x128xf32>
    %9 = arith.mulf %7, %8 : vector<8x128xf32>
    %10 = arith.addf %4, %9 : vector<8x128xf32>
    %c0_6 = arith.constant 0 : index
    %c2 = arith.constant 2 : index
    %11 = vector.load %arg1[%c0_6, %c2] : memref<8x4xf32, #tpu.memory_space<vmem>>, vector<8x1xf32>
    %c2_7 = arith.constant 2 : index
    %c0_8 = arith.constant 0 : index
    %12 = vector.load %arg2[%c2_7, %c0_8] : memref<4x128xf32, #tpu.memory_space<vmem>>, vector<1x128xf32>
    %13 = vector.broadcast %11 : vector<8x1xf32> to vector<8x128xf32>
    %14 = vector.broadcast %12 : vector<1x128xf32> to vector<8x128xf32>
    %15 = arith.mulf %13, %14 : vector<8x128xf32>
    %16 = arith.addf %10, %15 : vector<8x128xf32>
    %c0_9 = arith.constant 0 : index
    %c3 = arith.constant 3 : index
    %17 = vector.load %arg1[%c0_9, %c3] : memref<8x4xf32, #tpu.memory_space<vmem>>, vector<8x1xf32>
    %c3_10 = arith.constant 3 : index
    %c0_11 = arith.constant 0 : index
    %18 = vector.load %arg2[%c3_10, %c0_11] : memref<4x128xf32, #tpu.memory_space<vmem>>, vector<1x128xf32>
    %19 = vector.broadcast %17 : vector<8x1xf32> to vector<8x128xf32>
    %20 = vector.broadcast %18 : vector<1x128xf32> to vector<8x128xf32>
    %21 = arith.mulf %19, %20 : vector<8x128xf32>
    %22 = arith.addf %16, %21 : vector<8x128xf32>
    %c0_12 = arith.constant 0 : index
    %c0_13 = arith.constant 0 : index
    %23 = vector.load %arg3[%c0_12, %c0_13] : memref<1x128xf32, #tpu.memory_space<vmem>>, vector<1x128xf32>
    %24 = vector.broadcast %23 : vector<1x128xf32> to vector<8x128xf32>
    %25 = arith.addf %22, %24 : vector<8x128xf32>
    %26 = math.sin %25 : vector<8x128xf32>
    %c0_14 = arith.constant 0 : index
    %c0_15 = arith.constant 0 : index
    %27 = vector.load %arg4[%c0_14, %c0_15] : memref<8x128xf32, #tpu.memory_space<vmem>>, vector<8x128xf32>
    tpu.vector_store %arg4[%c0_14, %c0_15], %26 {strides = array<i32>} : memref<8x128xf32, #tpu.memory_space<vmem>>, vector<8x128xf32>,
    return
  }
  func.func @transform_0(%arg0: i32) -> (i32, i32) {
    %c0_i32 = arith.constant 0 : i32
    %c0_i32_0 = arith.constant 0 : i32
    return %arg0, %c0_i32 : i32, i32
  }
  func.func @transform_1(%arg0: i32) -> (i32, i32) {
    %c0_i32 = arith.constant 0 : i32
    %c0_i32_0 = arith.constant 0 : i32
    %c0_i32_1 = arith.constant 0 : i32
    return %c0_i32, %c0_i32_0 : i32, i32
  }
  func.func @transform_2(%arg0: i32) -> (i32, i32) {
    %c0_i32 = arith.constant 0 : i32
    %c0_i32_0 = arith.constant 0 : i32
    %c0_i32_1 = arith.constant 0 : i32
    return %c0_i32, %c0_i32_0 : i32, i32
  }
  func.func @transform_3(%arg0: i32) -> (i32, i32) {
    %c0_i32 = arith.constant 0 : i32
    %c0_i32_0 = arith.constant 0 : i32
    return %arg0, %c0_i32 : i32, i32
  }
}

</mosaic_0001>

<llo_original>
// kernel: tpu_custom_call.1
$region0: #{tpu_custom_call.1}
  #allocation0 [shape = 'u32[]', space=smem, size = 0x4, offset = 0x4, fixed_abs, tag = 'smem constant byte address 0x4 - core index']
  #allocation1 [shape = 'u32[144,128]{1,0:T(1,128)}', space=vmem, size = 0x12000, scoped, tag = 'internal scratch']
  %s0 = inlined_call_operand.vmem [shape: f32[16,4], index: 0, kind: input, shape index: {}]
  %s1 = inlined_call_operand.vmem [shape: f32[4,128], index: 1, kind: input, shape index: {}]
  %s2 = inlined_call_operand.vmem [shape: f32[1,128], index: 2, kind: input, shape index: {}]
  %s3 = inlined_call_operand.hbm [shape: f32[16,128], index: 3, kind: output, shape index: {}]
  %s4 = sld [smem:[#allocation0]]
  $region45: #{tpu_custom_call.1} parent=0
    _
  %s6 = ssub.s32 1, %s4
  %s7 = scalar_select 0, %s6, %s4
  $region1: #{tpu_custom_call.1} parent=0
    #allocation2 [shape = 'u8[8192]{0}', space=vmem, size = 0x2000, scoped, tag = 'output window, operand 0']
    #allocation3 [shape = 's32[2]{0}', space=sflag, size = 0x8, scoped, tag = 'scoped memory for tpu_custom_call.1']
    %8 = vsyncpa [#allocation3], 0
    %s9 = scalar_lea.sflag [#allocation3], 1
    %10 = vsyncpa %s9, 0
    loop: start=0, step=1, limit=4
    $region2: #{tpu_custom_call.1} parent=1 // loop_pre_header
      _
    $region3: #{tpu_custom_call.1} parent=1 // loop_header
      %s12 = sphi 0, %s16
      %p13 = scmp.ge.s32.totalorder %s12, 4
      %s22 = sphi 0, %s24
      %s25 = sphi 0, %s22
      %s26 = sphi 0, %s25
      %s42 = sphi 0, %s26
      %s46 = sphi 0, %s46
      %s48 = sphi 0, %s46
      %s49 = sphi 0, %s48
      %s63 = sphi 0, %s49
      %s67 = sphi 0, %s67
      %s69 = sphi 0, %s67
      %s70 = sphi 0, %s69
      %s84 = sphi 0, %s70
      %s90 = sphi 0, %s92
      %s93 = sphi 0, %s90
      %s94 = sphi 0, %s93
      %s110 = sphi 0, %s94
    $region4: #{tpu_custom_call.1} parent=1 // loop_header_branch
      %15 = sbr.rel (%p13) target = $region8
    $region5: #{tpu_custom_call.1} parent=1 // loop_body
      %s17 = ssub.s32 %s12, 1
      %s18 = ssub.s32 %s12, 2
      %s19 = sadd.s32 %s12, 1
      %s20 = ssub.s32 %s12, %s19
      %p21 = scmp.eq.s32.totalorder %s20, 0
      %s23 = sadd.s32 %s22, 1
      %s24 = scalar_select %p21, %s22, %s23
      %p27 = pneg %p21
      %p28 = scmp.eq.s32.totalorder %s12, 1
      %p29 = por %p27, %p28
      %p30 = scmp.ne.s32.totalorder %s22, %s25
      %p31 = scmp.eq.s32.totalorder %s12, 0
      %p32 = por %p30, %p31
      %p33 = scmp.ne.s32.totalorder %s22, %s25
      %p34 = scmp.eq.s32.totalorder %s17, 1
      %p35 = por %p33, %p34
      %p36 = scmp.ne.s32.totalorder %s25, %s26
      %p37 = scmp.eq.s32.totalorder %s17, 0
      %p38 = por %p36, %p37
      %p39 = scmp.ne.s32.totalorder %s25, %s26
      %p40 = scmp.eq.s32.totalorder %s18, 1
      %p41 = por %p39, %p40
      %p43 = scmp.ne.s32.totalorder %s26, %s42
      %p44 = scmp.eq.s32.totalorder %s18, 0
      %p45 = por %p43, %p44
      %s47 = sadd.s32 %s46, 1
      %p50 = scmp.eq.s32.totalorder %s12, 1
      %p51 = scmp.ne.s32.totalorder %s46, %s48
      %p52 = scmp.eq.s32.totalorder %s12, 0
      %p53 = por %p51, %p52
      %p54 = scmp.ne.s32.totalorder %s46, %s48
      %p55 = scmp.eq.s32.totalorder %s17, 1
      %p56 = por %p54, %p55
      %p57 = scmp.ne.s32.totalorder %s48, %s49
      %p58 = scmp.eq.s32.totalorder %s17, 0
      %p59 = por %p57, %p58
      %p60 = scmp.ne.s32.totalorder %s48, %s49
      %p61 = scmp.eq.s32.totalorder %s18, 1
      %p62 = por %p60, %p61
      %p64 = scmp.ne.s32.totalorder %s49, %s63
      %p65 = scmp.eq.s32.totalorder %s18, 0
      %p66 = por %p64, %p65
      %s68 = sadd.s32 %s67, 1
      %p71 = scmp.eq.s32.totalorder %s12, 1
      %p72 = scmp.ne.s32.totalorder %s67, %s69
      %p73 = scmp.eq.s32.totalorder %s12, 0
      %p74 = por %p72, %p73
      %p75 = scmp.ne.s32.totalorder %s67, %s69
      %p76 = scmp.eq.s32.totalorder %s17, 1
      %p77 = por %p75, %p76
      %p78 = scmp.ne.s32.totalorder %s69, %s70
      %p79 = scmp.eq.s32.totalorder %s17, 0
      %p80 = por %p78, %p79
      %p81 = scmp.ne.s32.totalorder %s69, %s70
      %p82 = scmp.eq.s32.totalorder %s18, 1
      %p83 = por %p81, %p82
      %p85 = scmp.ne.s32.totalorder %s70, %s84
      %p86 = scmp.eq.s32.totalorder %s18, 0
      %p87 = por %p85, %p86
      %s88 = ssub.s32 %s12, %s19
      %p89 = scmp.eq.s32.totalorder %s88, 0
      %s91 = sadd.s32 %s90, 1
      %s92 = scalar_select %p89, %s90, %s91
      %p95 = pneg %p89
      %p96 = scmp.eq.s32.totalorder %s12, 1
      %p97 = por %p95, %p96
      %p98 = scmp.ne.s32.totalorder %s90, %s93
      %p99 = scmp.eq.s32.totalorder %s12, 0
      %p100 = por %p98, %p99
      %p101 = scmp.ne.s32.totalorder %s90, %s93
      %p102 = scmp.eq.s32.totalorder %s17, 1
      %p103 = por %p101, %p102
      %p104 = scmp.ne.s32.totalorder %s93, %s94
      %p105 = scmp.eq.s32.totalorder %s17, 0
      %p106 = por %p104, %p105
      %p107 = scmp.ne.s32.totalorder %s93, %s94
      %p108 = scmp.eq.s32.totalorder %s18, 1
      %p109 = por %p107, %p108
      %p111 = scmp.ne.s32.totalorder %s94, %s110
      %p112 = scmp.eq.s32.totalorder %s18, 0
      %p113 = por %p111, %p112
      %p114 = scmp.le.s32.totalorder 1, %s12
      %p115 = scmp.lt.s32.totalorder %s12, 3
      %p116 = pnand %p114, %p115
      %p117 = pneg %p116
      // Predicated region
      $region9: #{tpu_custom_call.1} parent=5 // pred_check
        _
      $region10: #{tpu_custom_call.1} parent=5 // pred_check_branch
        %119 = sbr.rel (%p116) target = $region12
      $region11: #{tpu_custom_call.1} parent=5 // pred_region
        %s120 = ssub.s32 %s12, 1
        // Predicated region
        $region13: #{tpu_custom_call.1} parent=11 // pred_check
          %p121 = pneg %p59
        $region14: #{tpu_custom_call.1} parent=11 // pred_check_branch
          %123 = sbr.rel (%p121) target = $region16
        $region15: #{tpu_custom_call.1} parent=11 // pred_region
          _
        $region16: #{tpu_custom_call.1} parent=11 // pred_fallthru
          _
        // Predicated region
        $region17: #{tpu_custom_call.1} parent=11 // pred_check
          %p124 = pneg %p80
        $region18: #{tpu_custom_call.1} parent=11 // pred_check_branch
          %126 = sbr.rel (%p124) target = $region20
        $region19: #{tpu_custom_call.1} parent=11 // pred_region
          _
        $region20: #{tpu_custom_call.1} parent=11 // pred_fallthru
          _
      $region12: #{tpu_custom_call.1} parent=5 // pred_fallthru
        _
      %p127 = scmp.lt.s32.totalorder %s12, 2
      // Predicated region
      $region21: #{tpu_custom_call.1} parent=5 // pred_check
        %p128 = pneg %p127
      $region22: #{tpu_custom_call.1} parent=5 // pred_check_branch
        %130 = sbr.rel (%p128) target = $region24
      $region23: #{tpu_custom_call.1} parent=5 // pred_region
        // Predicated region
        $region25: #{tpu_custom_call.1} parent=23 // pred_check
          %p131 = pneg %p32
        $region26: #{tpu_custom_call.1} parent=23 // pred_check_branch
          %133 = sbr.rel (%p131) target = $region28
        $region27: #{tpu_custom_call.1} parent=23 // pred_region
          %p134 = scmp.lt.s32.totalorder %s12, 1
          %s135 = scalar_select %p134, %s12, 1
          %s136 = smul.addr %s135, 8
          %s137 = scalar_lea.vmem %s0, %s136
        $region28: #{tpu_custom_call.1} parent=23 // pred_fallthru
          _
      $region24: #{tpu_custom_call.1} parent=5 // pred_fallthru
        _
      %p138 = scmp.le.s32.totalorder 1, %s12
      %p139 = scmp.lt.s32.totalorder %s12, 3
      %p140 = pnand %p138, %p139
      %p141 = pneg %p140
      // Predicated region
      $region29: #{tpu_custom_call.1} parent=5 // pred_check
        _
      $region30: #{tpu_custom_call.1} parent=5 // pred_check_branch
        %143 = sbr.rel (%p140) target = $region32
      $region31: #{tpu_custom_call.1} parent=5 // pred_region
        %s144 = ssub.s32 %s12, 1
        %p145 = scmp.lt.s32.totalorder %s17, 1
        %s146 = scalar_select %p145, %s17, 1
        %s147 = smul.addr %s146, 8
        %s148 = scalar_lea.vmem %s0, %s147
        %p149 = pneg %p38
        %p150 = pneg %p35
        %p151 = pneg %p59
        %p152 = pneg %p56
        %p153 = pneg %p80
        %p154 = pneg %p77
        %p155 = pneg %p106
        %p156 = pneg %p103
        %s157 = sand.u32 %s93, 1
        %s158 = scalar_lea.sflag [#allocation3], %s157
        %s159 = sand.u32 %s93, 1
        %s160 = smul.addr %s159, 8
        %s161 = scalar_lea.vmem [#allocation2], %s160
        %p162 = scmp.lt.s32.totalorder %s17, 1
        %s163 = scalar_select %p162, %s17, 1
        %s164 = smul.addr %s163, 8
        %s165 = scalar_lea.vmem %s0, %s164
        %v166 = vld [vmem:[%s165] sm:$0xff]
        %v167 = vld [vmem:[%s1] sm:$0x1]
        %169 = vset.pattern.permute.xlu0 0
        %170 = vperm.xlu0 %169, %v166
        %v171 = vpop.permute.xlu0 %170
        %v173 = vlaneseq
        %v174 = vshrl.u32 %v173, 7
        %v175 = vsub.s32 0, %v174
        %v176 = vrot.slane %v167, %v175
        %v177 = vmul.f32 %v171, %v176
        %v178 = vld [vmem:[%s1 + $0x1] sm:$0x1]
        %179 = vset.pattern.permute.xlu0 1
        %180 = vperm.xlu0 %179, %v166
        %v181 = vpop.permute.xlu0 %180
        %v183 = vlaneseq
        %v184 = vshrl.u32 %v183, 7
        %v185 = vsub.s32 0, %v184
        %v186 = vrot.slane %v178, %v185
        %v187 = vmul.f32 %v181, %v186
        %v188 = vadd.f32 %v177, %v187
        %v189 = vld [vmem:[%s1 + $0x2] sm:$0x1]
        %190 = vset.pattern.permute.xlu0 2
        %191 = vperm.xlu0 %190, %v166
        %v192 = vpop.permute.xlu0 %191
        %v194 = vlaneseq
        %v195 = vshrl.u32 %v194, 7
        %v196 = vsub.s32 0, %v195
        %v197 = vrot.slane %v189, %v196
        %v198 = vmul.f32 %v192, %v197
        %v199 = vadd.f32 %v188, %v198
        %v200 = vld [vmem:[%s1 + $0x3] sm:$0x1]
        %201 = vset.pattern.permute.xlu0 3
        %202 = vperm.xlu0 %201, %v166
        %v203 = vpop.permute.xlu0 %202
        %v205 = vlaneseq
        %v206 = vshrl.u32 %v205, 7
        %v207 = vsub.s32 0, %v206
        %v208 = vrot.slane %v200, %v207
        %v209 = vmul.f32 %v203, %v208
        %v210 = vadd.f32 %v199, %v209
        %v211 = vld [vmem:[%s2] sm:$0x1]
        %v213 = vlaneseq
        %v214 = vshrl.u32 %v213, 7
        %v215 = vsub.s32 0, %v214
        %v216 = vrot.slane %v211, %v215
        %v218 = vadd.f32 %v210, %v216
        %v219 = vand.u32 2147483647, %v218
        %vm220 = vcmp.le.f32.partialorder %v219, 0.7853982
        %vm221 = vcmp.lt.s32.totalorder %v218, 0
        %v222 = vand.u32 %v218, 2139095040
        %v223 = vshrl.u32 %v222, 23
        %v224 = vsub.s32 %v223, 127
        %v225 = vand.u32 2147483647, %v218
        %v226 = vand.u32 %v225, 8388607
        %v227 = vor.u32 %v226, 8388608
        %v228 = vsub.s32 0, %v227
        %v229 = vadd.s32 %v224, 1
        %vm230 = vcmp.gt.s32.totalorder %v229, 0
        %v231 = vsel %vm230, %v229, 0
        %v232 = vshrl.u32 %v231, 5
        %v233 = vand.u32 %v231, 31
        %v234 = vsub.s32 32, %v233
        %v235 = vshrl.u32 683565275, %v234
        %v236 = vshll.u32 683565275, %v233
        %v237 = vshrl.u32 2475754826, %v234
        %v238 = vor.u32 %v236, %v237
        %v239 = vshll.u32 2475754826, %v233
        %v240 = vshrl.u32 2131351028, %v234
        %v241 = vor.u32 %v239, %v240
        %v242 = vshll.u32 2131351028, %v233
        %v243 = vshrl.u32 2102212464, %v234
        %v244 = vor.u32 %v242, %v243
        %v245 = vshll.u32 2102212464, %v233
        %v246 = vshrl.u32 920167782, %v234
        %v247 = vor.u32 %v245, %v246
        %v248 = vshll.u32 920167782, %v233
        %v249 = vshrl.u32 1326507024, %v234
        %v250 = vor.u32 %v248, %v249
        %vm251 = vcmp.lt.s32.totalorder %v232, 1
        %vm252 = vcmp.lt.s32.totalorder %v232, 2
        %vm253 = vcmp.lt.s32.totalorder %v232, 3
        %vm254 = vcmp.lt.s32.totalorder %v232, 4
        %v255 = vsel %vm251, %v235, %v238
        %v256 = vsel %vm254, %v244, 2102212464
        %v257 = vsel %vm253, %v241, %v256
        %v258 = vsel %vm252, %v255, %v257
        %v259 = vsel %vm251, %v238, %v241
        %v260 = vsel %vm254, %v247, 920167782
        %v261 = vsel %vm253, %v244, %v260
        %v262 = vsel %vm252, %v259, %v261
        %v263 = vsel %vm251, %v241, %v244
        %v264 = vsel %vm254, %v250, 1326507024
        %v265 = vsel %vm253, %v247, %v264
        %v266 = vsel %vm252, %v263, %v265
        %v267 = vshll.u32 %v227, 8
        %v268 = vmul.u32.u64.compose %v267, %v266
        %v269 = vextract.low.u32 %v268
        %v270 = vextract.high.u32 %v268
        %v271 = vmul.u32.u64.compose %v267, %v262
        %v272 = vextract.low.u32 %v271
        %v273 = vextract.high.u32 %v271
        %v274 = vmul.u32 %v267, %v258
        %v275 = vadd.s32 %v270, %v272
        %vm276 = vc.u32 %v270, %v272
        %v277 = vadd.s32 %v273, 1
        %v278 = vsel %vm276, %v277, %v273
        %v279 = vadd.s32 %v274, %v278
        %v280 = vadd.s32 %v279, 536870912
        %v281 = vshrl.u32 %v280, 30
        %v282 = vshll.u32 %v281, 30
        %v283 = vsub.s32 %v279, %v282
        %vm284 = vcmp.lt.s32.totalorder %v283, 0
        %v285 = vsub.s32 0, %v283
        %v286 = vsel %vm284, %v285, %v283
        %v287 = vclz %v286
        %v288 = vsub.s32 %v287, 2
        %vm289 = vcmp.gt.s32.totalorder 0, %v288
        %v290 = vsel %vm289, 0, %v288
        %v291 = vsub.s32 32, %v290
        %v292 = vshll.u32 %v283, %v290
        %v293 = vshrl.u32 %v275, %v291
        %v294 = vor.u32 %v292, %v293
        %v295 = vsub.s32 4294967266, %v290
        %v296 = vadd.s32 %v295, 127
        %v297 = vshll.u32 %v296, 23
        %v298 = vor.u32 4788187, %v297
        %v299 = vand.u32 2147483647, %v298
        %v301 = vcvt.s32.f32 %v294
        %v302 = vmul.f32 %v301, %v299
        %v303 = vxor.u32 %v302, 2147483648
        %v304 = vsel %vm221, %v303, %v302
        %v305 = vsub.s32 4, %v281
        %v306 = vsel %vm221, %v305, %v281
        %v307 = vsel %vm220, %v218, %v304
        %v308 = vsel %vm220, 0, %v306
        %v309 = vcosq.f32.pop %v307
        %v310 = vsinq.f32.pop %v307
        %vm311 = vweird.f32 %v218
        %v312 = vadd.s32 %v308, 3
        %v313 = vand.u32 %v312, 3
        %vm314 = vcmp.lt.s32.totalorder %v313, 2
        %vm315 = vcmp.eq.s32.totalorder %v313, 0
        %v316 = vxor.u32 %v310, 2147483648
        %v317 = vsel %vm315, %v309, %v316
        %vm318 = vcmp.eq.s32.totalorder %v313, 2
        %v319 = vxor.u32 %v309, 2147483648
        %v320 = vsel %vm318, %v319, %v310
        %v321 = vsel %vm314, %v317, %v320
        %v322 = vsel %vm311, nan, %v321
        %323 = vst [vmem:[%s161] sm:$0xff] %v322
        %s324 = sand.u32 %s93, 1
        %s325 = scalar_lea.sflag [#allocation3], %s324
        %s326 = sand.u32 %s93, 1
        %s327 = smul.addr %s326, 8
        %s328 = scalar_lea.vmem [#allocation2], %s327
        // Predicated region
        $region33: #{tpu_custom_call.1} parent=31 // pred_check
          %p329 = pneg %p103
        $region34: #{tpu_custom_call.1} parent=31 // pred_check_branch
          %331 = sbr.rel (%p329) target = $region36
        $region35: #{tpu_custom_call.1} parent=31 // pred_region
          %s333 = ssub.s32 128, 128
          %334 = vsyncadd %s325, %s333
          %s335 = smul.addr %s17, 128
          %s336 = scalar_lea.hbm %s3, %s335
          %s338 = sshll.u32 %s328, 4
          %s339 = int_to_ptr.vmem [resolvable:$true] %s338
          %341 = dma.vmem_to_hbm [thread:$0]  %s339, 128, %s336, %s325
        $region36: #{tpu_custom_call.1} parent=31 // pred_fallthru
          _
      $region32: #{tpu_custom_call.1} parent=5 // pred_fallthru
        _
      %p342 = scmp.le.s32.totalorder 2, %s12
      // Predicated region
      $region37: #{tpu_custom_call.1} parent=5 // pred_check
        %p343 = pneg %p342
      $region38: #{tpu_custom_call.1} parent=5 // pred_check_branch
        %345 = sbr.rel (%p343) target = $region40
      $region39: #{tpu_custom_call.1} parent=5 // pred_region
        %s346 = ssub.s32 %s12, 2
        // Predicated region
        $region41: #{tpu_custom_call.1} parent=39 // pred_check
          %p347 = pneg %p109
        $region42: #{tpu_custom_call.1} parent=39 // pred_check_branch
          %349 = sbr.rel (%p347) target = $region44
        $region43: #{tpu_custom_call.1} parent=39 // pred_region
          %s350 = sand.u32 %s94, 1
          %s351 = scalar_lea.sflag [#allocation3], %s350
          %s352 = sand.u32 %s94, 1
          %s353 = smul.addr %s352, 8
          %s354 = scalar_lea.vmem [#allocation2], %s353
          %355 = dma.done %s351, 128
        $region44: #{tpu_custom_call.1} parent=39 // pred_fallthru
          _
      $region40: #{tpu_custom_call.1} parent=5 // pred_fallthru
        _
    $region6: #{tpu_custom_call.1} parent=1 // loop_footer
      %s16 = sadd.s32 1, %s12
    $region7: #{tpu_custom_call.1} parent=1 // loop_footer_branch
      %11 = sbr.rel target = $region3
    $region8: #{tpu_custom_call.1} parent=1 // loop_exit
      _
    %356 = vsyncpa [#allocation3], 1
    %s357 = scalar_lea.sflag [#allocation3], 1
    %358 = vsyncpa %s357, 1

</llo_original>
